<compile_context>
chip_gen: v7x
topology: tpu7x:2x2x1
jax: 0.10.0
libtpu: 0.0.40
codegen_flags: <defaults>
</compile_context>

<pallas_src>
import jax
import jax.numpy as jnp
from jax.experimental import pallas as pl
from jax.experimental.pallas import tpu as pltpu

IN_F = 65
H1 = 128
H2 = 256
H3 = 256


def _round_up(n, m):
    return ((n + m - 1) // m) * m


def mlp_kernel(x_ref, w1_ref, b1_ref, w2_ref, b2_ref, w3_ref, b3_ref, o_ref):
    # Layer 1: (tb, 65) @ (65, 128); bf16 operands, f32 accumulation.
    x = x_ref[...].astype(jnp.bfloat16)
    h = jnp.dot(x, w1_ref[...], preferred_element_type=jnp.float32)
    h = jnp.maximum(h + b1_ref[...], 0.0)
    # Layer 2: (tb, 128) @ (128, 256)
    h = jnp.dot(h.astype(jnp.bfloat16), w2_ref[...],
                preferred_element_type=jnp.float32)
    h = jnp.maximum(h + b2_ref[...], 0.0)
    # Layer 3: (tb, 256) @ (256, 256)
    h = jnp.dot(h.astype(jnp.bfloat16), w3_ref[...],
                preferred_element_type=jnp.float32)
    o_ref[...] = jnp.maximum(h + b3_ref[...], 0.0).astype(o_ref.dtype)


def _choose_tile_b(B, max_tile=512):
    """Aim for >= 4 grid steps (2 per v7x TC) while growing tiles up to 512."""
    tb = _round_up(max(pl.cdiv(_round_up(B, 8), 4), 8), 8)
    return min(tb, max_tile)


def features_ems_forward(x, params, *, out_dtype=jnp.bfloat16, max_tile_b=512):
    """x: (B, 65) float32 -> (B, 256) out_dtype.

    relu(relu(relu(x @ W1 + b1) @ W2 + b2) @ W3 + b3) with bf16 MXU operands
    and f32 accumulation / bias / ReLU; only the final store casts to
    out_dtype (pass jnp.float32 to match the torch module's output dtype).
    """
    w1, b1, w2, b2, w3, b3 = params
    B = x.shape[0]
    assert x.shape[1] == IN_F

    tb = _choose_tile_b(B, max_tile_b)
    grid = (pl.cdiv(B, tb),)   # last block may be partial: Pallas masks it

    # Host-side layout prep is weights-only (tiny, done once per params):
    # bf16 MXU operands, (1, out) f32 bias rows.  x is passed through raw.
    w1b = w1.astype(jnp.bfloat16)
    w2b = w2.astype(jnp.bfloat16)
    w3b = w3.astype(jnp.bfloat16)
    b1f = b1.reshape(1, H1).astype(jnp.float32)
    b2f = b2.reshape(1, H2).astype(jnp.float32)
    b3f = b3.reshape(1, H3).astype(jnp.float32)

    def fixed(shape):
        # Same full-array block every grid step -> weights stay VMEM-resident.
        return pl.BlockSpec(shape, lambda i: (0, 0))

    in_specs = [
        pl.BlockSpec((tb, IN_F), lambda i: (i, 0)),   # x batch tile, raw f32
        fixed((IN_F, H1)), fixed((1, H1)),
        fixed((H1, H2)), fixed((1, H2)),
        fixed((H2, H3)), fixed((1, H3)),
    ]
    out_specs = pl.BlockSpec((tb, H3), lambda i: (i, 0))

    operands = (x, w1b, b1f, w2b, b2f, w3b, b3f)
    flops = 2 * B * (IN_F * H1 + H1 * H2 + H2 * H3)
    bytes_accessed = (
        sum(int(a.size) * a.dtype.itemsize for a in operands)
        + B * H3 * jnp.dtype(out_dtype).itemsize
    )

    return pl.pallas_call(
        mlp_kernel,
        out_shape=jax.ShapeDtypeStruct((B, H3), out_dtype),
        grid_spec=pltpu.PrefetchScalarGridSpec(
            num_scalar_prefetch=0,
            grid=grid,
            in_specs=in_specs,
            out_specs=out_specs,
        ),
        compiler_params=pltpu.CompilerParams(
            dimension_semantics=("parallel",),
        ),
        cost_estimate=pl.CostEstimate(
            flops=flops, transcendentals=0, bytes_accessed=bytes_accessed),
    )(*operands)


def init_params(key):
    """Deterministic synthetic params matching the torch module's shapes.

    torch stores Linear weight as (out, in); we keep the (in, out) transpose
    directly since the kernel computes x @ W + b.
    """
    ks = jax.random.split(key, 6)

    def lin(kw, kb, fan_in, fan_out):
        bound = 1.0 / jnp.sqrt(fan_in)
        w = jax.random.uniform(kw, (fan_in, fan_out), jnp.float32, -bound, bound)
        b = jax.random.uniform(kb, (1, fan_out), jnp.float32, -bound, bound)
        return w, b

    w1, b1 = lin(ks[0], ks[1], IN_F, H1)
    w2, b2 = lin(ks[2], ks[3], H1, H2)
    w3, b3 = lin(ks[4], ks[5], H2, H3)
    return (w1, b1, w2, b2, w3, b3)


def reference_forward(x, params):
    """Pure f32 reference matching the torch module's math."""
    w1, b1, w2, b2, w3, b3 = params
    h = jnp.maximum(jnp.dot(x, w1) + b1, 0.0)
    h = jnp.maximum(jnp.dot(h, w2) + b2, 0.0)
    return jnp.maximum(jnp.dot(h, w3) + b3, 0.0)


if __name__ == "__main__":
    key = jax.random.PRNGKey(0)
    kx, kp = jax.random.split(key)
    params = init_params(kp)

    # Small shapes: B=16 (tile divides batch), B=13 (exercises the masked
    # partial last block), plus one f32-output run (torch-exact storage dtype).
    cases = ((16, jnp.bfloat16), (13, jnp.bfloat16), (16, jnp.float32))
    for B, out_dtype in cases:
        x = jax.random.normal(jax.random.fold_in(kx, B), (B, IN_F),
                              dtype=jnp.float32)
        out = jax.block_until_ready(
            features_ems_forward(x, params, out_dtype=out_dtype))
        ref = reference_forward(x, params)
        assert out.shape == (B, H3) and out.dtype == out_dtype
        err = float(jnp.max(jnp.abs(out.astype(jnp.float32) - ref)))
        assert err < 3e-2, f"mismatch B={B} dtype={out_dtype} max_err={err}"

    print("KERNEL_OK")
</pallas_src>

<mosaic_0001>
module attributes {stable_mosaic.version = 11 : i64} {
  func.func @mlp_kernel(%arg0: i32, %arg1: memref<8x65xf32, #tpu.memory_space<vmem>>, %arg2: memref<65x128xbf16, #tpu.memory_space<vmem>>, %arg3: memref<1x128xf32, #tpu.memory_space<vmem>>, %arg4: memref<128x256xbf16, #tpu.memory_space<vmem>>, %arg5: memref<1x256xf32, #tpu.memory_space<vmem>>, %arg6: memref<256x256xbf16, #tpu.memory_space<vmem>>, %arg7: memref<1x256xf32, #tpu.memory_space<vmem>>, %arg8: memref<8x256xbf16, #tpu.memory_space<vmem>>) attributes {dimension_semantics = [#tpu.dimension_semantics<parallel>], iteration_bounds = array<i64: 2>, scalar_prefetch = 0 : i64, scratch_operands = 0 : i64, tpu.core_type = #tpu.core_type<tc>, window_params = [{transform_indices = @transform_0, window_bounds = array<i64: 8, 65>}, {pipeline_mode = #tpu.pipeline_mode<synchronous>, transform_indices = @transform_1, window_bounds = array<i64: 65, 128>}, {pipeline_mode = #tpu.pipeline_mode<synchronous>, transform_indices = @transform_2, window_bounds = array<i64: 1, 128>}, {pipeline_mode = #tpu.pipeline_mode<synchronous>, transform_indices = @transform_3, window_bounds = array<i64: 128, 256>}, {pipeline_mode = #tpu.pipeline_mode<synchronous>, transform_indices = @transform_4, window_bounds = array<i64: 1, 256>}, {pipeline_mode = #tpu.pipeline_mode<synchronous>, transform_indices = @transform_5, window_bounds = array<i64: 256, 256>}, {pipeline_mode = #tpu.pipeline_mode<synchronous>, transform_indices = @transform_6, window_bounds = array<i64: 1, 256>}, {transform_indices = @transform_7, window_bounds = array<i64: 8, 256>}]} {
    %c0 = arith.constant 0 : index
    %c0_0 = arith.constant 0 : index
    %0 = vector.load %arg1[%c0, %c0_0] : memref<8x65xf32, #tpu.memory_space<vmem>>, vector<8x65xf32>
    %1 = arith.truncf %0 : vector<8x65xf32> to vector<8x65xbf16>
    %c0_1 = arith.constant 0 : index
    %c0_2 = arith.constant 0 : index
    %2 = vector.load %arg2[%c0_1, %c0_2] : memref<65x128xbf16, #tpu.memory_space<vmem>>, vector<65x128xbf16>
    %cst = arith.constant dense<0.000000e+00> : vector<8x128xf32>
    %3 = tpu.matmul %1, %2, %cst {dimension_numbers = #tpu.dot_dimension_numbers<[1], [0], [0], [1], [0, 0, 1, 1], [], []>} : vector<8x65xbf16>, vector<65x128xbf16>, vector<8x128xf32> -> vector<8x128xf32>
    %c0_3 = arith.constant 0 : index
    %c0_4 = arith.constant 0 : index
    %4 = vector.load %arg3[%c0_3, %c0_4] : memref<1x128xf32, #tpu.memory_space<vmem>>, vector<1x128xf32>
    %5 = vector.broadcast %4 : vector<1x128xf32> to vector<8x128xf32>
    %6 = arith.addf %3, %5 : vector<8x128xf32>
    %cst_5 = arith.constant 0.000000e+00 : f32
    %7 = vector.broadcast %cst_5 : f32 to vector<8x128xf32>
    %8 = arith.maximumf %6, %7 : vector<8x128xf32>
    %9 = arith.truncf %8 : vector<8x128xf32> to vector<8x128xbf16>
    %c0_6 = arith.constant 0 : index
    %c0_7 = arith.constant 0 : index
    %10 = vector.load %arg4[%c0_6, %c0_7] : memref<128x256xbf16, #tpu.memory_space<vmem>>, vector<128x256xbf16>
    %cst_8 = arith.constant dense<0.000000e+00> : vector<8x256xf32>
    %11 = tpu.matmul %9, %10, %cst_8 {dimension_numbers = #tpu.dot_dimension_numbers<[1], [0], [0], [1], [0, 0, 1, 1], [], []>} : vector<8x128xbf16>, vector<128x256xbf16>, vector<8x256xf32> -> vector<8x256xf32>
    %c0_9 = arith.constant 0 : index
    %c0_10 = arith.constant 0 : index
    %12 = vector.load %arg5[%c0_9, %c0_10] : memref<1x256xf32, #tpu.memory_space<vmem>>, vector<1x256xf32>
    %13 = vector.broadcast %12 : vector<1x256xf32> to vector<8x256xf32>
    %14 = arith.addf %11, %13 : vector<8x256xf32>
    %cst_11 = arith.constant 0.000000e+00 : f32
    %15 = vector.broadcast %cst_11 : f32 to vector<8x256xf32>
    %16 = arith.maximumf %14, %15 : vector<8x256xf32>
    %17 = arith.truncf %16 : vector<8x256xf32> to vector<8x256xbf16>
    %c0_12 = arith.constant 0 : index
    %c0_13 = arith.constant 0 : index
    %18 = vector.load %arg6[%c0_12, %c0_13] : memref<256x256xbf16, #tpu.memory_space<vmem>>, vector<256x256xbf16>
    %cst_14 = arith.constant dense<0.000000e+00> : vector<8x256xf32>
    %19 = tpu.matmul %17, %18, %cst_14 {dimension_numbers = #tpu.dot_dimension_numbers<[1], [0], [0], [1], [0, 0, 1, 1], [], []>} : vector<8x256xbf16>, vector<256x256xbf16>, vector<8x256xf32> -> vector<8x256xf32>
    %c0_15 = arith.constant 0 : index
    %c0_16 = arith.constant 0 : index
    %20 = vector.load %arg7[%c0_15, %c0_16] : memref<1x256xf32, #tpu.memory_space<vmem>>, vector<1x256xf32>
    %21 = vector.broadcast %20 : vector<1x256xf32> to vector<8x256xf32>
    %22 = arith.addf %19, %21 : vector<8x256xf32>
    %cst_17 = arith.constant 0.000000e+00 : f32
    %23 = vector.broadcast %cst_17 : f32 to vector<8x256xf32>
    %24 = arith.maximumf %22, %23 : vector<8x256xf32>
    %25 = arith.truncf %24 : vector<8x256xf32> to vector<8x256xbf16>
    %c0_18 = arith.constant 0 : index
    %c0_19 = arith.constant 0 : index
    %26 = vector.load %arg8[%c0_18, %c0_19] : memref<8x256xbf16, #tpu.memory_space<vmem>>, vector<8x256xbf16>
    tpu.vector_store %arg8[%c0_18, %c0_19], %25 {strides = array<i32>} : memref<8x256xbf16, #tpu.memory_space<vmem>>, vector<8x256xbf16>,
    return
  }
  func.func @transform_0(%arg0: i32) -> (i32, i32) {
    %c0_i32 = arith.constant 0 : i32
    %c0_i32_0 = arith.constant 0 : i32
    return %arg0, %c0_i32 : i32, i32
  }
  func.func @transform_1(%arg0: i32) -> (i32, i32) {
    %c0_i32 = arith.constant 0 : i32
    %c0_i32_0 = arith.constant 0 : i32
    %c0_i32_1 = arith.constant 0 : i32
    return %c0_i32, %c0_i32_0 : i32, i32
  }
  func.func @transform_2(%arg0: i32) -> (i32, i32) {
    %c0_i32 = arith.constant 0 : i32
    %c0_i32_0 = arith.constant 0 : i32
    %c0_i32_1 = arith.constant 0 : i32
    return %c0_i32, %c0_i32_0 : i32, i32
  }
  func.func @transform_3(%arg0: i32) -> (i32, i32) {
    %c0_i32 = arith.constant 0 : i32
    %c0_i32_0 = arith.constant 0 : i32
    %c0_i32_1 = arith.constant 0 : i32
    return %c0_i32, %c0_i32_0 : i32, i32
  }
  func.func @transform_4(%arg0: i32) -> (i32, i32) {
    %c0_i32 = arith.constant 0 : i32
    %c0_i32_0 = arith.constant 0 : i32
    %c0_i32_1 = arith.constant 0 : i32
    return %c0_i32, %c0_i32_0 : i32, i32
  }
  func.func @transform_5(%arg0: i32) -> (i32, i32) {
    %c0_i32 = arith.constant 0 : i32
    %c0_i32_0 = arith.constant 0 : i32
    %c0_i32_1 = arith.constant 0 : i32
    return %c0_i32, %c0_i32_0 : i32, i32
  }
  func.func @transform_6(%arg0: i32) -> (i32, i32) {
    %c0_i32 = arith.constant 0 : i32
    %c0_i32_0 = arith.constant 0 : i32
    %c0_i32_1 = arith.constant 0 : i32
    return %c0_i32, %c0_i32_0 : i32, i32
  }
  func.func @transform_7(%arg0: i32) -> (i32, i32) {
    %c0_i32 = arith.constant 0 : i32
    %c0_i32_0 = arith.constant 0 : i32
    return %arg0, %c0_i32 : i32, i32
  }
}

</mosaic_0001>

<llo_original>
// kernel: tpu_custom_call.1
$region0: #{tpu_custom_call.1}
  #allocation0 [shape = 'u32[]', space=smem, size = 0x4, offset = 0x4, fixed_abs, tag = 'smem constant byte address 0x4 - core index']
  #allocation1 [shape = 'u32[144,128]{1,0:T(1,128)}', space=vmem, size = 0x12000, scoped, tag = 'internal scratch']
  %s0 = inlined_call_operand.hbm [shape: f32[16,65], index: 0, kind: input, shape index: {}]
  %s1 = inlined_call_operand.hbm [shape: bf16[65,128], index: 1, kind: input, shape index: {}]
  %s2 = inlined_call_operand.vmem [shape: f32[1,128], index: 2, kind: input, shape index: {}]
  %s3 = inlined_call_operand.hbm [shape: bf16[128,256], index: 3, kind: input, shape index: {}]
  %s4 = inlined_call_operand.vmem [shape: f32[1,256], index: 4, kind: input, shape index: {}]
  %s5 = inlined_call_operand.hbm [shape: bf16[256,256], index: 5, kind: input, shape index: {}]
  %s6 = inlined_call_operand.vmem [shape: f32[1,256], index: 6, kind: input, shape index: {}]
  %s7 = inlined_call_operand.hbm [shape: bf16[16,256], index: 7, kind: output, shape index: {}]
  %s8 = sld [smem:[#allocation0]]
  $region77: #{tpu_custom_call.1} parent=0
    _
  %s10 = ssub.s32 1, %s8
  %s11 = scalar_select 0, %s10, %s8
  $region1: #{tpu_custom_call.1} parent=0
    #allocation2 [shape = 'u8[8192]{0}', space=vmem, size = 0x2000, scoped, tag = 'input window, operand 0']
    #allocation3 [shape = 's32[2]{0}', space=sflag, size = 0x8, scoped, tag = 'scoped memory for tpu_custom_call.1']
    #allocation4 [shape = 's32[2]{0}', space=sflag, size = 0x8, scoped, tag = 'scoped memory for tpu_custom_call.1']
    #allocation5 [shape = 'u8[18432]{0}', space=vmem, size = 0x4800, scoped, tag = 'input window, operand 1, single buffered']
    #allocation6 [shape = 's32[1]{0}', space=sflag, size = 0x4, scoped, tag = 'scoped memory for tpu_custom_call.1']
    #allocation7 [shape = 'u8[65536]{0}', space=vmem, size = 0x10000, scoped, tag = 'input window, operand 3, single buffered']
    #allocation8 [shape = 'u8[131072]{0}', space=vmem, size = 0x20000, scoped, tag = 'input window, operand 5, single buffered']
    #allocation9 [shape = 's32[1]{0}', space=sflag, size = 0x4, scoped, tag = 'scoped memory for tpu_custom_call.1']
    #allocation10 [shape = 'u8[8192]{0}', space=vmem, size = 0x2000, scoped, tag = 'output window, operand 0']
    %12 = vsyncpa [#allocation3], 0
    %s13 = scalar_lea.sflag [#allocation3], 1
    %14 = vsyncpa %s13, 0
    %15 = vsyncpa [#allocation6], 0
    %16 = vsyncpa [#allocation9], 0
    %17 = vsyncpa [#allocation4], 0
    %s18 = scalar_lea.sflag [#allocation4], 1
    %19 = vsyncpa %s18, 0
    loop: start=0, step=1, limit=4
    $region2: #{tpu_custom_call.1} parent=1 // loop_pre_header
      _
    $region3: #{tpu_custom_call.1} parent=1 // loop_header
      %s21 = sphi 0, %s25
      %p22 = scmp.ge.s32.totalorder %s21, 4
      %s31 = sphi 0, %s33
      %s34 = sphi 0, %s31
      %s35 = sphi 0, %s34
      %s51 = sphi 0, %s35
      %s55 = sphi 0, %s55
      %s57 = sphi 0, %s55
      %s58 = sphi 0, %s57
      %s72 = sphi 0, %s58
      %s76 = sphi 0, %s76
      %s78 = sphi 0, %s76
      %s79 = sphi 0, %s78
      %s93 = sphi 0, %s79
      %s97 = sphi 0, %s97
      %s99 = sphi 0, %s97
      %s100 = sphi 0, %s99
      %s114 = sphi 0, %s100
      %s118 = sphi 0, %s118
      %s120 = sphi 0, %s118
      %s121 = sphi 0, %s120
      %s135 = sphi 0, %s121
      %s139 = sphi 0, %s139
      %s141 = sphi 0, %s139
      %s142 = sphi 0, %s141
      %s156 = sphi 0, %s142
      %s160 = sphi 0, %s160
      %s162 = sphi 0, %s160
      %s163 = sphi 0, %s162
      %s177 = sphi 0, %s163
      %s183 = sphi 0, %s185
      %s186 = sphi 0, %s183
      %s187 = sphi 0, %s186
      %s203 = sphi 0, %s187
    $region4: #{tpu_custom_call.1} parent=1 // loop_header_branch
      %24 = sbr.rel (%p22) target = $region8
    $region5: #{tpu_custom_call.1} parent=1 // loop_body
      %s26 = ssub.s32 %s21, 1
      %s27 = ssub.s32 %s21, 2
      %s28 = sadd.s32 %s21, 1
      %s29 = ssub.s32 %s21, %s28
      %p30 = scmp.eq.s32.totalorder %s29, 0
      %s32 = sadd.s32 %s31, 1
      %s33 = scalar_select %p30, %s31, %s32
      %p36 = pneg %p30
      %p37 = scmp.eq.s32.totalorder %s21, 1
      %p38 = por %p36, %p37
      %p39 = scmp.ne.s32.totalorder %s31, %s34
      %p40 = scmp.eq.s32.totalorder %s21, 0
      %p41 = por %p39, %p40
      %p42 = scmp.ne.s32.totalorder %s31, %s34
      %p43 = scmp.eq.s32.totalorder %s26, 1
      %p44 = por %p42, %p43
      %p45 = scmp.ne.s32.totalorder %s34, %s35
      %p46 = scmp.eq.s32.totalorder %s26, 0
      %p47 = por %p45, %p46
      %p48 = scmp.ne.s32.totalorder %s34, %s35
      %p49 = scmp.eq.s32.totalorder %s27, 1
      %p50 = por %p48, %p49
      %p52 = scmp.ne.s32.totalorder %s35, %s51
      %p53 = scmp.eq.s32.totalorder %s27, 0
      %p54 = por %p52, %p53
      %s56 = sadd.s32 %s55, 1
      %p59 = scmp.eq.s32.totalorder %s21, 1
      %p60 = scmp.ne.s32.totalorder %s55, %s57
      %p61 = scmp.eq.s32.totalorder %s21, 0
      %p62 = por %p60, %p61
      %p63 = scmp.ne.s32.totalorder %s55, %s57
      %p64 = scmp.eq.s32.totalorder %s26, 1
      %p65 = por %p63, %p64
      %p66 = scmp.ne.s32.totalorder %s57, %s58
      %p67 = scmp.eq.s32.totalorder %s26, 0
      %p68 = por %p66, %p67
      %p69 = scmp.ne.s32.totalorder %s57, %s58
      %p70 = scmp.eq.s32.totalorder %s27, 1
      %p71 = por %p69, %p70
      %p73 = scmp.ne.s32.totalorder %s58, %s72
      %p74 = scmp.eq.s32.totalorder %s27, 0
      %p75 = por %p73, %p74
      %s77 = sadd.s32 %s76, 1
      %p80 = scmp.eq.s32.totalorder %s21, 1
      %p81 = scmp.ne.s32.totalorder %s76, %s78
      %p82 = scmp.eq.s32.totalorder %s21, 0
      %p83 = por %p81, %p82
      %p84 = scmp.ne.s32.totalorder %s76, %s78
      %p85 = scmp.eq.s32.totalorder %s26, 1
      %p86 = por %p84, %p85
      %p87 = scmp.ne.s32.totalorder %s78, %s79
      %p88 = scmp.eq.s32.totalorder %s26, 0
      %p89 = por %p87, %p88
      %p90 = scmp.ne.s32.totalorder %s78, %s79
      %p91 = scmp.eq.s32.totalorder %s27, 1
      %p92 = por %p90, %p91
      %p94 = scmp.ne.s32.totalorder %s79, %s93
      %p95 = scmp.eq.s32.totalorder %s27, 0
      %p96 = por %p94, %p95
      %s98 = sadd.s32 %s97, 1
      %p101 = scmp.eq.s32.totalorder %s21, 1
      %p102 = scmp.ne.s32.totalorder %s97, %s99
      %p103 = scmp.eq.s32.totalorder %s21, 0
      %p104 = por %p102, %p103
      %p105 = scmp.ne.s32.totalorder %s97, %s99
      %p106 = scmp.eq.s32.totalorder %s26, 1
      %p107 = por %p105, %p106
      %p108 = scmp.ne.s32.totalorder %s99, %s100
      %p109 = scmp.eq.s32.totalorder %s26, 0
      %p110 = por %p108, %p109
      %p111 = scmp.ne.s32.totalorder %s99, %s100
      %p112 = scmp.eq.s32.totalorder %s27, 1
      %p113 = por %p111, %p112
      %p115 = scmp.ne.s32.totalorder %s100, %s114
      %p116 = scmp.eq.s32.totalorder %s27, 0
      %p117 = por %p115, %p116
      %s119 = sadd.s32 %s118, 1
      %p122 = scmp.eq.s32.totalorder %s21, 1
      %p123 = scmp.ne.s32.totalorder %s118, %s120
      %p124 = scmp.eq.s32.totalorder %s21, 0
      %p125 = por %p123, %p124
      %p126 = scmp.ne.s32.totalorder %s118, %s120
      %p127 = scmp.eq.s32.totalorder %s26, 1
      %p128 = por %p126, %p127
      %p129 = scmp.ne.s32.totalorder %s120, %s121
      %p130 = scmp.eq.s32.totalorder %s26, 0
      %p131 = por %p129, %p130
      %p132 = scmp.ne.s32.totalorder %s120, %s121
      %p133 = scmp.eq.s32.totalorder %s27, 1
      %p134 = por %p132, %p133
      %p136 = scmp.ne.s32.totalorder %s121, %s135
      %p137 = scmp.eq.s32.totalorder %s27, 0
      %p138 = por %p136, %p137
      %s140 = sadd.s32 %s139, 1
      %p143 = scmp.eq.s32.totalorder %s21, 1
      %p144 = scmp.ne.s32.totalorder %s139, %s141
      %p145 = scmp.eq.s32.totalorder %s21, 0
      %p146 = por %p144, %p145
      %p147 = scmp.ne.s32.totalorder %s139, %s141
      %p148 = scmp.eq.s32.totalorder %s26, 1
      %p149 = por %p147, %p148
      %p150 = scmp.ne.s32.totalorder %s141, %s142
      %p151 = scmp.eq.s32.totalorder %s26, 0
      %p152 = por %p150, %p151
      %p153 = scmp.ne.s32.totalorder %s141, %s142
      %p154 = scmp.eq.s32.totalorder %s27, 1
      %p155 = por %p153, %p154
      %p157 = scmp.ne.s32.totalorder %s142, %s156
      %p158 = scmp.eq.s32.totalorder %s27, 0
      %p159 = por %p157, %p158
      %s161 = sadd.s32 %s160, 1
      %p164 = scmp.eq.s32.totalorder %s21, 1
      %p165 = scmp.ne.s32.totalorder %s160, %s162
      %p166 = scmp.eq.s32.totalorder %s21, 0
      %p167 = por %p165, %p166
      %p168 = scmp.ne.s32.totalorder %s160, %s162
      %p169 = scmp.eq.s32.totalorder %s26, 1
      %p170 = por %p168, %p169
      %p171 = scmp.ne.s32.totalorder %s162, %s163
      %p172 = scmp.eq.s32.totalorder %s26, 0
      %p173 = por %p171, %p172
      %p174 = scmp.ne.s32.totalorder %s162, %s163
      %p175 = scmp.eq.s32.totalorder %s27, 1
      %p176 = por %p174, %p175
      %p178 = scmp.ne.s32.totalorder %s163, %s177
      %p179 = scmp.eq.s32.totalorder %s27, 0
      %p180 = por %p178, %p179
      %s181 = ssub.s32 %s21, %s28
      %p182 = scmp.eq.s32.totalorder %s181, 0
      %s184 = sadd.s32 %s183, 1
      %s185 = scalar_select %p182, %s183, %s184
      %p188 = pneg %p182
      %p189 = scmp.eq.s32.totalorder %s21, 1
      %p190 = por %p188, %p189
      %p191 = scmp.ne.s32.totalorder %s183, %s186
      %p192 = scmp.eq.s32.totalorder %s21, 0
      %p193 = por %p191, %p192
      %p194 = scmp.ne.s32.totalorder %s183, %s186
      %p195 = scmp.eq.s32.totalorder %s26, 1
      %p196 = por %p194, %p195
      %p197 = scmp.ne.s32.totalorder %s186, %s187
      %p198 = scmp.eq.s32.totalorder %s26, 0
      %p199 = por %p197, %p198
      %p200 = scmp.ne.s32.totalorder %s186, %s187
      %p201 = scmp.eq.s32.totalorder %s27, 1
      %p202 = por %p200, %p201
      %p204 = scmp.ne.s32.totalorder %s187, %s203
      %p205 = scmp.eq.s32.totalorder %s27, 0
      %p206 = por %p204, %p205
      %p207 = scmp.le.s32.totalorder 1, %s21
      %p208 = scmp.lt.s32.totalorder %s21, 3
      %p209 = pnand %p207, %p208
      %p210 = pneg %p209
      // Predicated region
      $region9: #{tpu_custom_call.1} parent=5 // pred_check
        _
      $region10: #{tpu_custom_call.1} parent=5 // pred_check_branch
        %212 = sbr.rel (%p209) target = $region12
      $region11: #{tpu_custom_call.1} parent=5 // pred_region
        %s213 = ssub.s32 %s21, 1
        // Predicated region
        $region13: #{tpu_custom_call.1} parent=11 // pred_check
          %p214 = pneg %p68
        $region14: #{tpu_custom_call.1} parent=11 // pred_check_branch
          %216 = sbr.rel (%p214) target = $region16
        $region15: #{tpu_custom_call.1} parent=11 // pred_region
          %s218 = ssub.s32 576, 576
          %219 = vsyncadd [#allocation6], %s218
          %s220 = sshll.u32 [#allocation5], 4
          %s221 = int_to_ptr.vmem [resolvable:$true] %s220
          %226 = dma.hbm_to_vmem [thread:$0]  %s1, 576, %s221, [#allocation6], 64, 64, 4
        $region16: #{tpu_custom_call.1} parent=11 // pred_fallthru
          _
        // Predicated region
        $region17: #{tpu_custom_call.1} parent=11 // pred_check
          %p227 = pneg %p89
        $region18: #{tpu_custom_call.1} parent=11 // pred_check_branch
          %229 = sbr.rel (%p227) target = $region20
        $region19: #{tpu_custom_call.1} parent=11 // pred_region
          _
        $region20: #{tpu_custom_call.1} parent=11 // pred_fallthru
          _
        // Predicated region
        $region21: #{tpu_custom_call.1} parent=11 // pred_check
          %p230 = pneg %p110
        $region22: #{tpu_custom_call.1} parent=11 // pred_check_branch
          %232 = sbr.rel (%p230) target = $region24
        $region23: #{tpu_custom_call.1} parent=11 // pred_region
          %s234 = ssub.s32 2048, 2048
          %235 = vsyncadd [#allocation6], %s234
          %s236 = sshll.u32 [#allocation7], 4
          %s237 = int_to_ptr.vmem [resolvable:$true] %s236
          %242 = dma.hbm_to_vmem [thread:$0]  %s3, 2048, %s237, [#allocation6], 128, 128, 8
        $region24: #{tpu_custom_call.1} parent=11 // pred_fallthru
          _
        // Predicated region
        $region25: #{tpu_custom_call.1} parent=11 // pred_check
          %p243 = pneg %p131
        $region26: #{tpu_custom_call.1} parent=11 // pred_check_branch
          %245 = sbr.rel (%p243) target = $region28
        $region27: #{tpu_custom_call.1} parent=11 // pred_region
          _
        $region28: #{tpu_custom_call.1} parent=11 // pred_fallthru
          _
        // Predicated region
        $region29: #{tpu_custom_call.1} parent=11 // pred_check
          %p246 = pneg %p152
        $region30: #{tpu_custom_call.1} parent=11 // pred_check_branch
          %248 = sbr.rel (%p246) target = $region32
        $region31: #{tpu_custom_call.1} parent=11 // pred_region
          %s250 = ssub.s32 4096, 4096
          %251 = vsyncadd [#allocation9], %s250
          %s252 = sshll.u32 [#allocation8], 4
          %s253 = int_to_ptr.vmem [resolvable:$true] %s252
          %258 = dma.hbm_to_vmem [thread:$0]  %s5, 4096, %s253, [#allocation9], 128, 128, 8
        $region32: #{tpu_custom_call.1} parent=11 // pred_fallthru
          _
        // Predicated region
        $region33: #{tpu_custom_call.1} parent=11 // pred_check
          %p259 = pneg %p173
        $region34: #{tpu_custom_call.1} parent=11 // pred_check_branch
          %261 = sbr.rel (%p259) target = $region36
        $region35: #{tpu_custom_call.1} parent=11 // pred_region
          _
        $region36: #{tpu_custom_call.1} parent=11 // pred_fallthru
          _
      $region12: #{tpu_custom_call.1} parent=5 // pred_fallthru
        _
      %p262 = scmp.lt.s32.totalorder %s21, 2
      // Predicated region
      $region37: #{tpu_custom_call.1} parent=5 // pred_check
        %p263 = pneg %p262
      $region38: #{tpu_custom_call.1} parent=5 // pred_check_branch
        %265 = sbr.rel (%p263) target = $region40
      $region39: #{tpu_custom_call.1} parent=5 // pred_region
        // Predicated region
        $region41: #{tpu_custom_call.1} parent=39 // pred_check
          %p266 = pneg %p41
        $region42: #{tpu_custom_call.1} parent=39 // pred_check_branch
          %268 = sbr.rel (%p266) target = $region44
        $region43: #{tpu_custom_call.1} parent=39 // pred_region
          %s269 = sand.u32 %s31, 1
          %s270 = scalar_lea.sflag [#allocation3], %s269
          %s271 = sand.u32 %s31, 1
          %s272 = smul.addr %s271, 8
          %s273 = scalar_lea.vmem [#allocation2], %s272
          %s275 = ssub.s32 128, 128
          %276 = vsyncadd %s270, %s275
          %s277 = smul.addr %s21, 128
          %s278 = scalar_lea.hbm %s0, %s277
          %s280 = sshll.u32 %s273, 4
          %s281 = int_to_ptr.vmem [resolvable:$true] %s280
          %283 = dma.hbm_to_vmem [thread:$0]  %s278, 128, %s281, %s270
        $region44: #{tpu_custom_call.1} parent=39 // pred_fallthru
          _
      $region40: #{tpu_custom_call.1} parent=5 // pred_fallthru
        _
      %p284 = scmp.le.s32.totalorder 1, %s21
      %p285 = scmp.lt.s32.totalorder %s21, 3
      %p286 = pnand %p284, %p285
      %p287 = pneg %p286
      // Predicated region
      $region45: #{tpu_custom_call.1} parent=5 // pred_check
        _
      $region46: #{tpu_custom_call.1} parent=5 // pred_check_branch
        %289 = sbr.rel (%p286) target = $region48
      $region47: #{tpu_custom_call.1} parent=5 // pred_region
        %s290 = ssub.s32 %s21, 1
        %s291 = sand.u32 %s34, 1
        %s292 = scalar_lea.sflag [#allocation3], %s291
        %s293 = sand.u32 %s34, 1
        %s294 = smul.addr %s293, 8
        %s295 = scalar_lea.vmem [#allocation2], %s294
        // Predicated region
        $region49: #{tpu_custom_call.1} parent=47 // pred_check
          %p296 = pneg %p47
        $region50: #{tpu_custom_call.1} parent=47 // pred_check_branch
          %298 = sbr.rel (%p296) target = $region52
        $region51: #{tpu_custom_call.1} parent=47 // pred_region
          %299 = dma.done %s292, 128
        $region52: #{tpu_custom_call.1} parent=47 // pred_fallthru
          _
        // Predicated region
        $region53: #{tpu_custom_call.1} parent=47 // pred_check
          %p300 = pneg %p68
        $region54: #{tpu_custom_call.1} parent=47 // pred_check_branch
          %302 = sbr.rel (%p300) target = $region56
        $region55: #{tpu_custom_call.1} parent=47 // pred_region
          %303 = dma.done [#allocation6], 576
        $region56: #{tpu_custom_call.1} parent=47 // pred_fallthru
          _
        // Predicated region
        $region57: #{tpu_custom_call.1} parent=47 // pred_check
          %p304 = pneg %p110
        $region58: #{tpu_custom_call.1} parent=47 // pred_check_branch
          %306 = sbr.rel (%p304) target = $region60
        $region59: #{tpu_custom_call.1} parent=47 // pred_region
          %307 = dma.done [#allocation6], 2048
        $region60: #{tpu_custom_call.1} parent=47 // pred_fallthru
          _
        // Predicated region
        $region61: #{tpu_custom_call.1} parent=47 // pred_check
          %p308 = pneg %p152
        $region62: #{tpu_custom_call.1} parent=47 // pred_check_branch
          %310 = sbr.rel (%p308) target = $region64
        $region63: #{tpu_custom_call.1} parent=47 // pred_region
          %311 = dma.done [#allocation9], 4096
        $region64: #{tpu_custom_call.1} parent=47 // pred_fallthru
          _
        %s312 = sand.u32 %s34, 1
        %s313 = scalar_lea.sflag [#allocation3], %s312
        %s314 = sand.u32 %s34, 1
        %s315 = smul.addr %s314, 8
        %s316 = scalar_lea.vmem [#allocation2], %s315
        %p317 = pneg %p47
        %p318 = pneg %p44
        %p319 = pneg %p68
        %p320 = pneg %p65
        %p321 = pneg %p89
        %p322 = pneg %p86
        %p323 = pneg %p110
        %p324 = pneg %p107
        %p325 = pneg %p131
        %p326 = pneg %p128
        %p327 = pneg %p152
        %p328 = pneg %p149
        %p329 = pneg %p173
        %p330 = pneg %p170
        %p331 = pneg %p199
        %p332 = pneg %p196
        %s333 = sand.u32 %s186, 1
        %s334 = scalar_lea.sflag [#allocation4], %s333
        %s335 = sand.u32 %s186, 1
        %s336 = smul.addr %s335, 8
        %s337 = scalar_lea.vmem [#allocation10], %s336
        %v339 = vld [vmem:[%s295] sm:$0xff]
        %v340 = vpack.c.bf16 %v339, %v339
        %v341 = vld [vmem:[#allocation5] sm:$0xf]
        %v342 = vld [vmem:[#allocation5 + $0x4] sm:$0xf]
        %v343 = vld [vmem:[#allocation5 + $0x8] sm:$0xf]
        %v344 = vld [vmem:[#allocation5 + $0xc] sm:$0xf]
        %v345 = vld [vmem:[#allocation5 + $0x10] sm:$0xf]
        %v346 = vld [vmem:[#allocation5 + $0x14] sm:$0xf]
        %v347 = vld [vmem:[#allocation5 + $0x18] sm:$0xf]
        %v348 = vld [vmem:[#allocation5 + $0x1c] sm:$0xf]
        %v349 = vld [vmem:[#allocation5 + $0x20] sm:$0x1]
        %v350 = vld [vmem:[%s2] sm:$0x1]
        %v352 = vlaneseq
        %v353 = vshrl.u32 %v352, 7
        %v354 = vsub.s32 0, %v353
        %v355 = vrot.slane %v350, %v354
        %v366 = vunpack.c.l.b16 %v341
        %v367 = vunpack.c.l.b16 %v342
        %v368 = vunpack.c.l.b16 %v343
        %v369 = vunpack.c.l.b16 %v344
        %v370 = vunpack.c.l.b16 %v345
        %v371 = vunpack.c.l.b16 %v346
        %v372 = vunpack.c.l.b16 %v347
        %v373 = vunpack.c.l.b16 %v348
        %v374 = vunpack.c.l.b16 %v349
        %v375 = vpack.c.b16 %v367, %v366
        %v376 = vpack.c.b16 %v369, %v368
        %v377 = vpack.c.b16 %v371, %v370
        %v378 = vpack.c.b16 %v373, %v372
        %v379 = vpack.c.b16 %v374, %v374
        %vm384 = vcmask 531456
        %v386 = vsel %vm384, %v340, 0
        %vm388 = vcmask 1040384
        %v389 = vsel 0, 4294967295, 65535
        %v390 = vsel %vm388, %v389, 0
        %v392 = vand.u32 %v379, %v390
        %394 = vmatprep.subr.bf16.mxu0 0
        %395 = vmatpush1.bf16.msra.mxu0 %v375
        %396 = vmatprep.subr.bf16.mxu0 0
        %397 = vmatpush1.bf16.msra.mxu0 %v376
        %398 = vmatprep.subr.bf16.mxu0 0
        %399 = vmatpush1.bf16.msra.mxu0 %v377
        %400 = vmatprep.subr.bf16.mxu0 0
        %401 = vmatpush1.bf16.msra.mxu0 %v378
        %402 = vmatprep.subr.bf16.mxu0 0
        %403 = vmatpush1.bf16.msra.mxu0 %v392
        %404 = vmatprep.subr.bf16.mxu0 0
        %405 = vmatpush1.bf16.msra.mxu0 0
        %406 = vmatprep.subr.bf16.mxu0 0
        %407 = vmatpush1.bf16.msra.mxu0 0
        %408 = vmatprep.subr.bf16.mxu0 0
        %409 = vmatpush1.bf16.msra.mxu0 0
        %410 = vmatprep.subr.bf16.mxu0 0
        %411 = vmatpush1.bf16.msra.mxu0 0
        %412 = vmatprep.subr.bf16.mxu0 0
        %413 = vmatpush1.bf16.msra.mxu0 0
        %414 = vmatprep.subr.bf16.mxu0 0
        %415 = vmatpush1.bf16.msra.mxu0 0
        %416 = vmatprep.subr.bf16.mxu0 0
        %417 = vmatpush1.bf16.msra.mxu0 0
        %418 = vmatprep.subr.bf16.mxu0 0
        %419 = vmatpush1.bf16.msra.mxu0 0
        %420 = vmatprep.subr.bf16.mxu0 0
        %421 = vmatpush1.bf16.msra.mxu0 0
        %422 = vmatprep.subr.bf16.mxu0 0
        %423 = vmatpush1.bf16.msra.mxu0 0
        %424 = vmatprep.subr.bf16.mxu0 0
        %425 = vmatpush1.bf16.msra.mxu0 0
        %426 = vmatprep.mubr.bf16.mxu0 0
        %427 = vmatmul.mubr.bf16.gmra.mrb[0].mxu0 %v386
        %v428 = vpop.f32.mrb[0].mxu0
        %v429 = vadd.f32 %v355, %v428
        %v430 = vpop.f32.mrb[0].mxu0
        %v431 = vpop.f32.mrb[0].mxu0
        %v432 = vpop.f32.mrb[0].mxu0
        %433 = vdwg.mxu0
        %v434 = vmax.f32 %v429, 0.0
        %v435 = vpack.c.bf16 %v434, %v434
        %v436 = vld [vmem:[#allocation7] sm:$0xff]
        %v437 = vld [vmem:[#allocation7 + $0x8] sm:$0xff]
        %v438 = vld [vmem:[#allocation7 + $0x10] sm:$0xff]
        %v439 = vld [vmem:[#allocation7 + $0x18] sm:$0xff]
        %v440 = vld [vmem:[#allocation7 + $0x20] sm:$0xff]
        %v441 = vld [vmem:[#allocation7 + $0x28] sm:$0xff]
        %v442 = vld [vmem:[#allocation7 + $0x30] sm:$0xff]
        %v443 = vld [vmem:[#allocation7 + $0x38] sm:$0xff]
        %v444 = vld [vmem:[#allocation7 + $0x40] sm:$0xff]
        %v445 = vld [vmem:[#allocation7 + $0x48] sm:$0xff]
        %v446 = vld [vmem:[#allocation7 + $0x50] sm:$0xff]
        %v447 = vld [vmem:[#allocation7 + $0x58] sm:$0xff]
        %v448 = vld [vmem:[#allocation7 + $0x60] sm:$0xff]
        %v449 = vld [vmem:[#allocation7 + $0x68] sm:$0xff]
        %v450 = vld [vmem:[#allocation7 + $0x70] sm:$0xff]
        %v451 = vld [vmem:[#allocation7 + $0x78] sm:$0xff]
        %v452 = vld [vmem:[%s4] sm:$0x3]
        %v454 = vlaneseq
        %v455 = vshrl.u32 %v454, 7
        %v456 = vsub.s32 0, %v455
        %v457 = vrot.slane %v452, %v456
        %v458 = vlaneseq
        %v459 = vshrl.u32 %v458, 7
        %v460 = vsub.s32 1, %v459
        %v461 = vrot.slane %v452, %v460
        %v480 = vunpack.c.l.b16 %v436
        %v481 = vunpack.c.h.b16 %v436
        %v482 = vunpack.c.l.b16 %v437
        %v483 = vunpack.c.h.b16 %v437
        %v484 = vunpack.c.l.b16 %v438
        %v485 = vunpack.c.h.b16 %v438
        %v486 = vunpack.c.l.b16 %v439
        %v487 = vunpack.c.h.b16 %v439
        %v488 = vunpack.c.l.b16 %v440
        %v489 = vunpack.c.h.b16 %v440
        %v490 = vunpack.c.l.b16 %v441
        %v491 = vunpack.c.h.b16 %v441
        %v492 = vunpack.c.l.b16 %v442
        %v493 = vunpack.c.h.b16 %v442
        %v494 = vunpack.c.l.b16 %v443
        %v495 = vunpack.c.h.b16 %v443
        %v496 = vunpack.c.l.b16 %v444
        %v497 = vunpack.c.h.b16 %v444
        %v498 = vunpack.c.l.b16 %v445
        %v499 = vunpack.c.h.b16 %v445
        %v500 = vunpack.c.l.b16 %v446
        %v501 = vunpack.c.h.b16 %v446
        %v502 = vunpack.c.l.b16 %v447
        %v503 = vunpack.c.h.b16 %v447
        %v504 = vunpack.c.l.b16 %v448
        %v505 = vunpack.c.h.b16 %v448
        %v506 = vunpack.c.l.b16 %v449
        %v507 = vunpack.c.h.b16 %v449
        %v508 = vunpack.c.l.b16 %v450
        %v509 = vunpack.c.h.b16 %v450
        %v510 = vunpack.c.l.b16 %v451
        %v511 = vunpack.c.h.b16 %v451
        %v512 = vpack.c.b16 %v482, %v480
        %v513 = vpack.c.b16 %v483, %v481
        %v514 = vpack.c.b16 %v486, %v484
        %v515 = vpack.c.b16 %v487, %v485
        %v516 = vpack.c.b16 %v490, %v488
        %v517 = vpack.c.b16 %v491, %v489
        %v518 = vpack.c.b16 %v494, %v492
        %v519 = vpack.c.b16 %v495, %v493
        %v520 = vpack.c.b16 %v498, %v496
        %v521 = vpack.c.b16 %v499, %v497
        %v522 = vpack.c.b16 %v502, %v500
        %v523 = vpack.c.b16 %v503, %v501
        %v524 = vpack.c.b16 %v506, %v504
        %v525 = vpack.c.b16 %v507, %v505
        %v526 = vpack.c.b16 %v510, %v508
        %v527 = vpack.c.b16 %v511, %v509
        %544 = vmatprep.subr.bf16.mxu0 %v513
        %545 = vmatpush1.bf16.msra.mxu0 %v512
        %546 = vmatprep.subr.bf16.mxu0 %v515
        %547 = vmatpush1.bf16.msra.mxu0 %v514
        %548 = vmatprep.subr.bf16.mxu0 %v517
        %549 = vmatpush1.bf16.msra.mxu0 %v516
        %550 = vmatprep.subr.bf16.mxu0 %v519
        %551 = vmatpush1.bf16.msra.mxu0 %v518
        %552 = vmatprep.subr.bf16.mxu0 %v521
        %553 = vmatpush1.bf16.msra.mxu0 %v520
        %554 = vmatprep.subr.bf16.mxu0 %v523
        %555 = vmatpush1.bf16.msra.mxu0 %v522
        %556 = vmatprep.subr.bf16.mxu0 %v525
        %557 = vmatpush1.bf16.msra.mxu0 %v524
        %558 = vmatprep.subr.bf16.mxu0 %v527
        %559 = vmatpush1.bf16.msra.mxu0 %v526
        %560 = vmatprep.subr.bf16.mxu0 0
        %561 = vmatpush1.bf16.msra.mxu0 0
        %562 = vmatprep.subr.bf16.mxu0 0
        %563 = vmatpush1.bf16.msra.mxu0 0
        %564 = vmatprep.subr.bf16.mxu0 0
        %565 = vmatpush1.bf16.msra.mxu0 0
        %566 = vmatprep.subr.bf16.mxu0 0
        %567 = vmatpush1.bf16.msra.mxu0 0
        %568 = vmatprep.subr.bf16.mxu0 0
        %569 = vmatpush1.bf16.msra.mxu0 0
        %570 = vmatprep.subr.bf16.mxu0 0
        %571 = vmatpush1.bf16.msra.mxu0 0
        %572 = vmatprep.subr.bf16.mxu0 0
        %573 = vmatpush1.bf16.msra.mxu0 0
        %574 = vmatprep.subr.bf16.mxu0 0
        %575 = vmatpush1.bf16.msra.mxu0 0
        %576 = vmatprep.mubr.bf16.mxu0 0
        %577 = vmatmul.mubr.bf16.gmra.mrb[0].mxu0 %v435
        %v578 = vpop.f32.mrb[0].mxu0
        %v579 = vadd.f32 %v457, %v578
        %v580 = vpop.f32.mrb[0].mxu0
        %v581 = vadd.f32 %v461, %v580
        %v582 = vpop.f32.mrb[0].mxu0
        %v583 = vpop.f32.mrb[0].mxu0
        %584 = vdwg.mxu0
        %v585 = vmax.f32 %v579, 0.0
        %v586 = vmax.f32 %v581, 0.0
        %v587 = vpack.c.bf16 %v585, %v585
        %v588 = vpack.c.bf16 %v586, %v586
        %v589 = vld [vmem:[#allocation8] sm:$0xff]
        %v590 = vld [vmem:[#allocation8 + $0x8] sm:$0xff]
        %v591 = vld [vmem:[#allocation8 + $0x10] sm:$0xff]
        %v592 = vld [vmem:[#allocation8 + $0x18] sm:$0xff]
        %v593 = vld [vmem:[#allocation8 + $0x20] sm:$0xff]
        %v594 = vld [vmem:[#allocation8 + $0x28] sm:$0xff]
        %v595 = vld [vmem:[#allocation8 + $0x30] sm:$0xff]
        %v596 = vld [vmem:[#allocation8 + $0x38] sm:$0xff]
        %v597 = vld [vmem:[#allocation8 + $0x40] sm:$0xff]
        %v598 = vld [vmem:[#allocation8 + $0x48] sm:$0xff]
        %v599 = vld [vmem:[#allocation8 + $0x50] sm:$0xff]
        %v600 = vld [vmem:[#allocation8 + $0x58] sm:$0xff]
        %v601 = vld [vmem:[#allocation8 + $0x60] sm:$0xff]
        %v602 = vld [vmem:[#allocation8 + $0x68] sm:$0xff]
        %v603 = vld [vmem:[#allocation8 + $0x70] sm:$0xff]
        %v604 = vld [vmem:[#allocation8 + $0x78] sm:$0xff]
        %v605 = vld [vmem:[#allocation8 + $0x80] sm:$0xff]
        %v606 = vld [vmem:[#allocation8 + $0x88] sm:$0xff]
        %v607 = vld [vmem:[#allocation8 + $0x90] sm:$0xff]
        %v608 = vld [vmem:[#allocation8 + $0x98] sm:$0xff]
        %v609 = vld [vmem:[#allocation8 + $0xa0] sm:$0xff]
        %v610 = vld [vmem:[#allocation8 + $0xa8] sm:$0xff]
        %v611 = vld [vmem:[#allocation8 + $0xb0] sm:$0xff]
        %v612 = vld [vmem:[#allocation8 + $0xb8] sm:$0xff]
        %v613 = vld [vmem:[#allocation8 + $0xc0] sm:$0xff]
        %v614 = vld [vmem:[#allocation8 + $0xc8] sm:$0xff]
        %v615 = vld [vmem:[#allocation8 + $0xd0] sm:$0xff]
        %v616 = vld [vmem:[#allocation8 + $0xd8] sm:$0xff]
        %v617 = vld [vmem:[#allocation8 + $0xe0] sm:$0xff]
        %v618 = vld [vmem:[#allocation8 + $0xe8] sm:$0xff]
        %v619 = vld [vmem:[#allocation8 + $0xf0] sm:$0xff]
        %v620 = vld [vmem:[#allocation8 + $0xf8] sm:$0xff]
        %v621 = vld [vmem:[%s6] sm:$0x3]
        %v623 = vlaneseq
        %v624 = vshrl.u32 %v623, 7
        %v625 = vsub.s32 0, %v624
        %v626 = vrot.slane %v621, %v625
        %v627 = vlaneseq
        %v628 = vshrl.u32 %v627, 7
        %v629 = vsub.s32 1, %v628
        %v630 = vrot.slane %v621, %v629
        %v665 = vunpack.c.l.b16 %v589
        %v666 = vunpack.c.h.b16 %v589
        %v667 = vunpack.c.l.b16 %v590
        %v668 = vunpack.c.h.b16 %v590
        %v669 = vunpack.c.l.b16 %v591
        %v670 = vunpack.c.h.b16 %v591
        %v671 = vunpack.c.l.b16 %v592
        %v672 = vunpack.c.h.b16 %v592
        %v673 = vunpack.c.l.b16 %v593
        %v674 = vunpack.c.h.b16 %v593
        %v675 = vunpack.c.l.b16 %v594
        %v676 = vunpack.c.h.b16 %v594
        %v677 = vunpack.c.l.b16 %v595
        %v678 = vunpack.c.h.b16 %v595
        %v679 = vunpack.c.l.b16 %v596
        %v680 = vunpack.c.h.b16 %v596
        %v681 = vunpack.c.l.b16 %v597
        %v682 = vunpack.c.h.b16 %v597
        %v683 = vunpack.c.l.b16 %v598
        %v684 = vunpack.c.h.b16 %v598
        %v685 = vunpack.c.l.b16 %v599
        %v686 = vunpack.c.h.b16 %v599
        %v687 = vunpack.c.l.b16 %v600
        %v688 = vunpack.c.h.b16 %v600
        %v689 = vunpack.c.l.b16 %v601
        %v690 = vunpack.c.h.b16 %v601
        %v691 = vunpack.c.l.b16 %v602
        %v692 = vunpack.c.h.b16 %v602
        %v693 = vunpack.c.l.b16 %v603
        %v694 = vunpack.c.h.b16 %v603
        %v695 = vunpack.c.l.b16 %v604
        %v696 = vunpack.c.h.b16 %v604
        %v697 = vunpack.c.l.b16 %v605
        %v698 = vunpack.c.h.b16 %v605
        %v699 = vunpack.c.l.b16 %v606
        %v700 = vunpack.c.h.b16 %v606
        %v701 = vunpack.c.l.b16 %v607
        %v702 = vunpack.c.h.b16 %v607
        %v703 = vunpack.c.l.b16 %v608
        %v704 = vunpack.c.h.b16 %v608
        %v705 = vunpack.c.l.b16 %v609
        %v706 = vunpack.c.h.b16 %v609
        %v707 = vunpack.c.l.b16 %v610
        %v708 = vunpack.c.h.b16 %v610
        %v709 = vunpack.c.l.b16 %v611
        %v710 = vunpack.c.h.b16 %v611
        %v711 = vunpack.c.l.b16 %v612
        %v712 = vunpack.c.h.b16 %v612
        %v713 = vunpack.c.l.b16 %v613
        %v714 = vunpack.c.h.b16 %v613
        %v715 = vunpack.c.l.b16 %v614
        %v716 = vunpack.c.h.b16 %v614
        %v717 = vunpack.c.l.b16 %v615
        %v718 = vunpack.c.h.b16 %v615
        %v719 = vunpack.c.l.b16 %v616
        %v720 = vunpack.c.h.b16 %v616
        %v721 = vunpack.c.l.b16 %v617
        %v722 = vunpack.c.h.b16 %v617
        %v723 = vunpack.c.l.b16 %v618
        %v724 = vunpack.c.h.b16 %v618
        %v725 = vunpack.c.l.b16 %v619
        %v726 = vunpack.c.h.b16 %v619
        %v727 = vunpack.c.l.b16 %v620
        %v728 = vunpack.c.h.b16 %v620
        %v729 = vpack.c.b16 %v667, %v665
        %v730 = vpack.c.b16 %v668, %v666
        %v731 = vpack.c.b16 %v671, %v669
        %v732 = vpack.c.b16 %v672, %v670
        %v733 = vpack.c.b16 %v675, %v673
        %v734 = vpack.c.b16 %v676, %v674
        %v735 = vpack.c.b16 %v679, %v677
        %v736 = vpack.c.b16 %v680, %v678
        %v737 = vpack.c.b16 %v683, %v681
        %v738 = vpack.c.b16 %v684, %v682
        %v739 = vpack.c.b16 %v687, %v685
        %v740 = vpack.c.b16 %v688, %v686
        %v741 = vpack.c.b16 %v691, %v689
        %v742 = vpack.c.b16 %v692, %v690
        %v743 = vpack.c.b16 %v695, %v693
        %v744 = vpack.c.b16 %v696, %v694
        %v745 = vpack.c.b16 %v699, %v697
        %v746 = vpack.c.b16 %v700, %v698
        %v747 = vpack.c.b16 %v703, %v701
        %v748 = vpack.c.b16 %v704, %v702
        %v749 = vpack.c.b16 %v707, %v705
        %v750 = vpack.c.b16 %v708, %v706
        %v751 = vpack.c.b16 %v711, %v709
        %v752 = vpack.c.b16 %v712, %v710
        %v753 = vpack.c.b16 %v715, %v713
        %v754 = vpack.c.b16 %v716, %v714
        %v755 = vpack.c.b16 %v719, %v717
        %v756 = vpack.c.b16 %v720, %v718
        %v757 = vpack.c.b16 %v723, %v721
        %v758 = vpack.c.b16 %v724, %v722
        %v759 = vpack.c.b16 %v727, %v725
        %v760 = vpack.c.b16 %v728, %v726
        %793 = vmatprep.subr.bf16.mxu0 %v730
        %794 = vmatpush1.bf16.msra.mxu0 %v729
        %795 = vmatprep.subr.bf16.mxu0 %v732
        %796 = vmatpush1.bf16.msra.mxu0 %v731
        %797 = vmatprep.subr.bf16.mxu0 %v734
        %798 = vmatpush1.bf16.msra.mxu0 %v733
        %799 = vmatprep.subr.bf16.mxu0 %v736
        %800 = vmatpush1.bf16.msra.mxu0 %v735
        %801 = vmatprep.subr.bf16.mxu0 %v738
        %802 = vmatpush1.bf16.msra.mxu0 %v737
        %803 = vmatprep.subr.bf16.mxu0 %v740
        %804 = vmatpush1.bf16.msra.mxu0 %v739
        %805 = vmatprep.subr.bf16.mxu0 %v742
        %806 = vmatpush1.bf16.msra.mxu0 %v741
        %807 = vmatprep.subr.bf16.mxu0 %v744
        %808 = vmatpush1.bf16.msra.mxu0 %v743
        %809 = vmatprep.subr.bf16.mxu0 %v746
        %810 = vmatpush1.bf16.msra.mxu0 %v745
        %811 = vmatprep.subr.bf16.mxu0 %v748
        %812 = vmatpush1.bf16.msra.mxu0 %v747
        %813 = vmatprep.subr.bf16.mxu0 %v750
        %814 = vmatpush1.bf16.msra.mxu0 %v749
        %815 = vmatprep.subr.bf16.mxu0 %v752
        %816 = vmatpush1.bf16.msra.mxu0 %v751
        %817 = vmatprep.subr.bf16.mxu0 %v754
        %818 = vmatpush1.bf16.msra.mxu0 %v753
        %819 = vmatprep.subr.bf16.mxu0 %v756
        %820 = vmatpush1.bf16.msra.mxu0 %v755
        %821 = vmatprep.subr.bf16.mxu0 %v758
        %822 = vmatpush1.bf16.msra.mxu0 %v757
        %823 = vmatprep.subr.bf16.mxu0 %v760
        %824 = vmatpush1.bf16.msra.mxu0 %v759
        %825 = vmatprep.mubr.bf16.mxu0 %v588
        %826 = vmatmul.mubr.bf16.gmra.mrb[0].mxu0 %v587
        %v827 = vpop.f32.mrb[0].mxu0
        %v828 = vadd.f32 %v626, %v827
        %v829 = vpop.f32.mrb[0].mxu0
        %v830 = vadd.f32 %v630, %v829
        %v831 = vpop.f32.mrb[0].mxu0
        %v832 = vpop.f32.mrb[0].mxu0
        %833 = vdwg.mxu0
        %v834 = vmax.f32 %v828, 0.0
        %v835 = vmax.f32 %v830, 0.0
        %v836 = vpack.c.bf16 %v834, %v834
        %v837 = vpack.c.bf16 %v835, %v835
        %v840 = vunpack.c.l.b16 %v836
        %v841 = vunpack.c.l.b16 %v837
        %v842 = vpack.c.b16 %v841, %v840
        %844 = vst [vmem:[%s337] sm:$0xff] %v842
        %s845 = sand.u32 %s186, 1
        %s846 = scalar_lea.sflag [#allocation4], %s845
        %s847 = sand.u32 %s186, 1
        %s848 = smul.addr %s847, 8
        %s849 = scalar_lea.vmem [#allocation10], %s848
        // Predicated region
        $region65: #{tpu_custom_call.1} parent=47 // pred_check
          %p850 = pneg %p196
        $region66: #{tpu_custom_call.1} parent=47 // pred_check_branch
          %852 = sbr.rel (%p850) target = $region68
        $region67: #{tpu_custom_call.1} parent=47 // pred_region
          %s854 = ssub.s32 128, 128
          %855 = vsyncadd %s846, %s854
          %s856 = smul.addr %s26, 2
          %s857 = smul.addr %s856, 64
          %s858 = scalar_lea.hbm %s7, %s857
          %s860 = sshll.u32 %s849, 4
          %s861 = int_to_ptr.vmem [resolvable:$true] %s860
          %863 = dma.vmem_to_hbm [thread:$0]  %s861, 128, %s858, %s846
        $region68: #{tpu_custom_call.1} parent=47 // pred_fallthru
          _
      $region48: #{tpu_custom_call.1} parent=5 // pred_fallthru
        _
      %p864 = scmp.le.s32.totalorder 2, %s21
      // Predicated region
      $region69: #{tpu_custom_call.1} parent=5 // pred_check
        %p865 = pneg %p864
      $region70: #{tpu_custom_call.1} parent=5 // pred_check_branch
        %867 = sbr.rel (%p865) target = $region72
      $region71: #{tpu_custom_call.1} parent=5 // pred_region
        %s868 = ssub.s32 %s21, 2
        // Predicated region
        $region73: #{tpu_custom_call.1} parent=71 // pred_check
          %p869 = pneg %p202
        $region74: #{tpu_custom_call.1} parent=71 // pred_check_branch
          %871 = sbr.rel (%p869) target = $region76
        $region75: #{tpu_custom_call.1} parent=71 // pred_region
          %s872 = sand.u32 %s187, 1
          %s873 = scalar_lea.sflag [#allocation4], %s872
          %s874 = sand.u32 %s187, 1
          %s875 = smul.addr %s874, 8
          %s876 = scalar_lea.vmem [#allocation10], %s875
          %877 = dma.done %s873, 128
        $region76: #{tpu_custom_call.1} parent=71 // pred_fallthru
          _
      $region72: #{tpu_custom_call.1} parent=5 // pred_fallthru
        _
    $region6: #{tpu_custom_call.1} parent=1 // loop_footer
      %s25 = sadd.s32 1, %s21
    $region7: #{tpu_custom_call.1} parent=1 // loop_footer_branch
      %20 = sbr.rel target = $region3
    $region8: #{tpu_custom_call.1} parent=1 // loop_exit
      _
    %878 = vsyncpa [#allocation3], 1
    %s879 = scalar_lea.sflag [#allocation3], 1
    %880 = vsyncpa %s879, 1
    %881 = vsyncpa [#allocation6], 1
    %882 = vsyncpa [#allocation9], 1
    %883 = vsyncpa [#allocation4], 1
    %s884 = scalar_lea.sflag [#allocation4], 1
    %885 = vsyncpa %s884, 1

</llo_original>
